<compile_context>
chip_gen: v7x
topology: tpu7x:2x2x1
jax: 0.10.0
libtpu: 0.0.40
codegen_flags: <defaults>
</compile_context>

<pallas_src>
import numpy as np

import jax
import jax.numpy as jnp
from jax import lax
from jax.experimental import pallas as pl
from jax.experimental.pallas import tpu as pltpu


def _gelu_exact(x):
    # Matches torch.nn.functional.gelu default (erf-based, not tanh approx).
    return 0.5 * x * (1.0 + lax.erf(x * (1.0 / jnp.sqrt(2.0).astype(x.dtype))))


def gated_mlp_kernel(x_ref, wgi_ref, wo_ref, bin_ref, bout_ref, o_ref, acc_ref):
    """Grid = (M // tm, d_mlp // tn); d_mlp axis is the (arbitrary) reduction axis."""
    j = pl.program_id(1)

    @pl.when(j == 0)
    def _():
        acc_ref[...] = jnp.zeros_like(acc_ref)

    x = x_ref[...]                                            # (tm, d_model)
    # Fused gate+in projection: wgi tile is [W_gate_tile | W_in_tile] -> (d_model, 2*tn)
    gi = jnp.dot(x, wgi_ref[...], preferred_element_type=jnp.float32)  # (tm, 2*tn)
    tn = gi.shape[1] // 2
    gate = gi[:, :tn]
    lin = gi[:, tn:]
    post = _gelu_exact(gate) * lin + bin_ref[...].astype(jnp.float32)  # (tm, tn)

    acc_ref[...] += jnp.dot(post.astype(wo_ref.dtype), wo_ref[...],
                            preferred_element_type=jnp.float32)        # (tm, d_model)

    @pl.when(j == pl.num_programs(1) - 1)
    def _():
        o_ref[...] = (acc_ref[...] + bout_ref[...].astype(jnp.float32)
                      ).astype(o_ref.dtype)


def _pick_tile(total: int, want: int, align: int) -> int:
    """Largest tile <= want that is a multiple of `align` and divides `total`,
    falling back to the full extent (always a legal block shape)."""
    if total <= want:
        return total
    t = (want // align) * align
    while t > 0 and total % t != 0:
        t -= align
    return t if t > 0 else total


def gated_mlp(x, W_gate, W_in, W_out, b_in, b_out, *, tm=256, tn=512):
    """x: [batch, pos, d_model] -> [batch, pos, d_model]."""
    batch, pos, d_model = x.shape
    d_mlp = W_in.shape[1]
    M = batch * pos

    itemsize = np.dtype(x.dtype).itemsize
    # Row-tile alignment: bf16 packs (16, 128) sublanes, f32 packs (8, 128).
    row_align = 16 if itemsize == 2 else 8
    tm = _pick_tile(M, tm, row_align)
    tn = _pick_tile(d_mlp, tn, 128)
    assert M % tm == 0 and d_mlp % tn == 0
    nj = d_mlp // tn

    x2 = x.reshape(M, d_model)
    b_in2 = b_in.reshape(1, d_mlp)
    b_out2 = b_out.reshape(1, d_model)

    # Fuse W_gate / W_in so that column-block j of W_gi is
    # [W_gate[:, j*tn:(j+1)*tn] | W_in[:, j*tn:(j+1)*tn]]  ->  (d_model, 2*tn)
    Wg3 = W_gate.reshape(d_model, nj, tn)
    Wi3 = W_in.reshape(d_model, nj, tn)
    W_gi = jnp.stack([Wg3, Wi3], axis=2).reshape(d_model, nj * 2 * tn)

    # Rough VMEM budget (double-buffered pipelined blocks + f32 accumulator),
    # with headroom; capped well below any generation's physical VMEM.
    vmem_est = 2 * itemsize * (
        tm * d_model            # x tile
        + d_model * 2 * tn      # fused gate/in weight tile
        + tn * d_model          # W_out tile
        + tn + d_model          # bias tiles
        + tm * d_model          # output tile
    ) + 4 * tm * d_model        # f32 accumulator scratch
    vmem_limit = min(int(1.5 * vmem_est) + (4 << 20), 100 << 20)

    cost = pl.CostEstimate(
        flops=6 * M * d_model * d_mlp,
        transcendentals=M * d_mlp,
        bytes_accessed=itemsize * (2 * M * d_model + 3 * d_model * d_mlp
                                   + d_mlp + d_model),
    )

    out2 = pl.pallas_call(
        gated_mlp_kernel,
        out_shape=jax.ShapeDtypeStruct((M, d_model), x.dtype),
        grid_spec=pltpu.PrefetchScalarGridSpec(
            num_scalar_prefetch=0,
            grid=(M // tm, nj),
            in_specs=[
                pl.BlockSpec((tm, d_model), lambda i, j: (i, 0)),       # x rows
                pl.BlockSpec((d_model, 2 * tn), lambda i, j: (0, j)),   # [W_gate|W_in] tile
                pl.BlockSpec((tn, d_model), lambda i, j: (j, 0)),       # W_out row tile
                pl.BlockSpec((1, tn), lambda i, j: (0, j)),             # b_in tile
                pl.BlockSpec((1, d_model), lambda i, j: (0, 0)),        # b_out
            ],
            out_specs=pl.BlockSpec((tm, d_model), lambda i, j: (i, 0)),
            scratch_shapes=[pltpu.VMEM((tm, d_model), jnp.float32)],    # f32 accumulator
        ),
        compiler_params=pltpu.CompilerParams(
            dimension_semantics=("parallel", "arbitrary"),
            vmem_limit_bytes=vmem_limit,
        ),
        cost_estimate=cost,
    )(x2, W_gi, W_out, b_in2, b_out2)

    return out2.reshape(batch, pos, d_model)


def gated_mlp_ref(x, W_gate, W_in, W_out, b_in, b_out):
    pre = jnp.einsum("bpd,dm->bpm", x.astype(jnp.float32),
                     W_gate.astype(jnp.float32))
    pre_linear = jnp.einsum("bpd,dm->bpm", x.astype(jnp.float32),
                            W_in.astype(jnp.float32))
    post = _gelu_exact(pre) * pre_linear + b_in.astype(jnp.float32)
    out = jnp.einsum("bpm,md->bpd", post,
                     W_out.astype(jnp.float32)) + b_out.astype(jnp.float32)
    return out.astype(x.dtype)


if __name__ == "__main__":
    # Small, TPU-tile-friendly config (tm clamps to M=16, tn clamps to d_mlp=256).
    batch, pos, d_model, d_mlp = 2, 8, 128, 256
    dtype = jnp.float32

    key = jax.random.PRNGKey(0)
    kx, kg, ki, ko = jax.random.split(key, 4)

    x = jax.random.normal(kx, (batch, pos, d_model), dtype=dtype)
    # Deterministic parameter init (Kaiming-ish scaling), synthetic weights.
    W_gate = jax.random.normal(kg, (d_model, d_mlp), dtype=dtype) / jnp.sqrt(d_model)
    W_in = jax.random.normal(ki, (d_model, d_mlp), dtype=dtype) / jnp.sqrt(d_model)
    W_out = jax.random.normal(ko, (d_mlp, d_model), dtype=dtype) / jnp.sqrt(d_mlp)
    b_in = 0.01 * jnp.arange(d_mlp, dtype=dtype)
    b_out = 0.01 * jnp.arange(d_model, dtype=dtype)

    out = gated_mlp(x, W_gate, W_in, W_out, b_in, b_out)
    out = jax.block_until_ready(out)

    ref = gated_mlp_ref(x, W_gate, W_in, W_out, b_in, b_out)
    assert out.shape == (batch, pos, d_model)
    assert jnp.allclose(out, ref, atol=1e-4, rtol=1e-4), "mismatch vs reference"

    # Also exercise the multi-tile reduction path (nj > 1, multiple row tiles).
    batch2, pos2, d_model2, d_mlp2 = 2, 256, 128, 512
    kx2, kg2, ki2, ko2 = jax.random.split(jax.random.PRNGKey(1), 4)
    x2 = jax.random.normal(kx2, (batch2, pos2, d_model2), dtype=dtype)
    Wg2 = jax.random.normal(kg2, (d_model2, d_mlp2), dtype=dtype) / jnp.sqrt(d_model2)
    Wi2 = jax.random.normal(ki2, (d_model2, d_mlp2), dtype=dtype) / jnp.sqrt(d_model2)
    Wo2 = jax.random.normal(ko2, (d_mlp2, d_model2), dtype=dtype) / jnp.sqrt(d_mlp2)
    bi2 = 0.01 * jnp.arange(d_mlp2, dtype=dtype)
    bo2 = 0.01 * jnp.arange(d_model2, dtype=dtype)

    out2 = jax.block_until_ready(
        gated_mlp(x2, Wg2, Wi2, Wo2, bi2, bo2, tm=256, tn=256))
    ref2 = gated_mlp_ref(x2, Wg2, Wi2, Wo2, bi2, bo2)
    assert jnp.allclose(out2, ref2, atol=2e-4, rtol=2e-4), "mismatch vs reference (tiled)"

    print("KERNEL_OK")
</pallas_src>

<mosaic_0001>
module attributes {stable_mosaic.version = 11 : i64} {
  func.func @gated_mlp_kernel(%arg0: i32, %arg1: i32, %arg2: memref<16x128xf32, #tpu.memory_space<vmem>>, %arg3: memref<128x512xf32, #tpu.memory_space<vmem>>, %arg4: memref<256x128xf32, #tpu.memory_space<vmem>>, %arg5: memref<1x256xf32, #tpu.memory_space<vmem>>, %arg6: memref<1x128xf32, #tpu.memory_space<vmem>>, %arg7: memref<16x128xf32, #tpu.memory_space<vmem>>, %arg8: memref<16x128xf32, #tpu.memory_space<vmem>>) attributes {dimension_semantics = [#tpu.dimension_semantics<parallel>, #tpu.dimension_semantics<arbitrary>], iteration_bounds = array<i64: 1, 1>, scalar_prefetch = 0 : i64, scratch_operands = 1 : i64, tpu.core_type = #tpu.core_type<tc>, window_params = [{transform_indices = @transform_0, window_bounds = array<i64: 16, 128>}, {transform_indices = @transform_1, window_bounds = array<i64: 128, 512>}, {transform_indices = @transform_2, window_bounds = array<i64: 256, 128>}, {transform_indices = @transform_3, window_bounds = array<i64: 1, 256>}, {pipeline_mode = #tpu.pipeline_mode<synchronous>, transform_indices = @transform_4, window_bounds = array<i64: 1, 128>}, {transform_indices = @transform_5, window_bounds = array<i64: 16, 128>}]} {
    %c0_i32 = arith.constant 0 : i32
    %0 = arith.cmpi eq, %arg1, %c0_i32 : i32
    %1 = arith.extui %0 : i1 to i32
    %c0_i32_0 = arith.constant 0 : i32
    %2 = arith.cmpi ne, %1, %c0_i32_0 : i32
    scf.if %2 {
      %cst_19 = arith.constant 0.000000e+00 : f32
      %30 = vector.broadcast %cst_19 : f32 to vector<16x128xf32>
      %c0_20 = arith.constant 0 : index
      %c0_21 = arith.constant 0 : index
      %31 = vector.load %arg8[%c0_20, %c0_21] : memref<16x128xf32, #tpu.memory_space<vmem>>, vector<16x128xf32>
      tpu.vector_store %arg8[%c0_20, %c0_21], %30 {strides = array<i32>} : memref<16x128xf32, #tpu.memory_space<vmem>>, vector<16x128xf32>,
    } else {
    }
    %c0 = arith.constant 0 : index
    %c0_1 = arith.constant 0 : index
    %3 = vector.load %arg2[%c0, %c0_1] : memref<16x128xf32, #tpu.memory_space<vmem>>, vector<16x128xf32>
    %c0_2 = arith.constant 0 : index
    %c0_3 = arith.constant 0 : index
    %4 = vector.load %arg3[%c0_2, %c0_3] : memref<128x512xf32, #tpu.memory_space<vmem>>, vector<128x512xf32>
    %cst = arith.constant dense<0.000000e+00> : vector<16x512xf32>
    %5 = tpu.matmul %3, %4, %cst {dimension_numbers = #tpu.dot_dimension_numbers<[1], [0], [0], [1], [0, 0, 1, 1], [], []>} : vector<16x128xf32>, vector<128x512xf32>, vector<16x512xf32> -> vector<16x512xf32>
    %6 = vector.extract_strided_slice %5 {offsets = [0, 0], sizes = [16, 256], strides = [1, 1]} : vector<16x512xf32> to vector<16x256xf32>
    %7 = vector.extract_strided_slice %5 {offsets = [0, 256], sizes = [16, 256], strides = [1, 1]} : vector<16x512xf32> to vector<16x256xf32>
    %cst_4 = arith.constant 5.000000e-01 : f32
    %8 = vector.broadcast %cst_4 : f32 to vector<16x256xf32>
    %9 = arith.mulf %8, %6 : vector<16x256xf32>
    %cst_5 = arith.constant 2.000000e+00 : f32
    %10 = math.sqrt %cst_5 : f32
    %cst_6 = arith.constant 1.000000e+00 : f32
    %11 = arith.divf %cst_6, %10 : f32
    %12 = vector.broadcast %11 : f32 to vector<16x256xf32>
    %13 = arith.mulf %6, %12 : vector<16x256xf32>
    %14 = math.erf %13 : vector<16x256xf32>
    %cst_7 = arith.constant 1.000000e+00 : f32
    %15 = vector.broadcast %cst_7 : f32 to vector<16x256xf32>
    %16 = arith.addf %15, %14 : vector<16x256xf32>
    %17 = arith.mulf %9, %16 : vector<16x256xf32>
    %18 = arith.mulf %17, %7 : vector<16x256xf32>
    %c0_8 = arith.constant 0 : index
    %c0_9 = arith.constant 0 : index
    %19 = vector.load %arg5[%c0_8, %c0_9] : memref<1x256xf32, #tpu.memory_space<vmem>>, vector<1x256xf32>
    %20 = vector.broadcast %19 : vector<1x256xf32> to vector<16x256xf32>
    %21 = arith.addf %18, %20 : vector<16x256xf32>
    %c0_10 = arith.constant 0 : index
    %c0_11 = arith.constant 0 : index
    %22 = vector.load %arg8[%c0_10, %c0_11] : memref<16x128xf32, #tpu.memory_space<vmem>>, vector<16x128xf32>
    %c0_12 = arith.constant 0 : index
    %c0_13 = arith.constant 0 : index
    %23 = vector.load %arg4[%c0_12, %c0_13] : memref<256x128xf32, #tpu.memory_space<vmem>>, vector<256x128xf32>
    %cst_14 = arith.constant dense<0.000000e+00> : vector<16x128xf32>
    %24 = tpu.matmul %21, %23, %cst_14 {dimension_numbers = #tpu.dot_dimension_numbers<[1], [0], [0], [1], [0, 0, 1, 1], [], []>} : vector<16x256xf32>, vector<256x128xf32>, vector<16x128xf32> -> vector<16x128xf32>
    %25 = arith.addf %22, %24 : vector<16x128xf32>
    %c0_15 = arith.constant 0 : index
    %c0_16 = arith.constant 0 : index
    %26 = vector.load %arg8[%c0_15, %c0_16] : memref<16x128xf32, #tpu.memory_space<vmem>>, vector<16x128xf32>
    tpu.vector_store %arg8[%c0_15, %c0_16], %25 {strides = array<i32>} : memref<16x128xf32, #tpu.memory_space<vmem>>, vector<16x128xf32>,
    %c0_i32_17 = arith.constant 0 : i32
    %27 = arith.cmpi eq, %arg1, %c0_i32_17 : i32
    %28 = arith.extui %27 : i1 to i32
    %c0_i32_18 = arith.constant 0 : i32
    %29 = arith.cmpi ne, %28, %c0_i32_18 : i32
    scf.if %29 {
      %c0_19 = arith.constant 0 : index
      %c0_20 = arith.constant 0 : index
      %30 = vector.load %arg8[%c0_19, %c0_20] : memref<16x128xf32, #tpu.memory_space<vmem>>, vector<16x128xf32>
      %c0_21 = arith.constant 0 : index
      %c0_22 = arith.constant 0 : index
      %31 = vector.load %arg6[%c0_21, %c0_22] : memref<1x128xf32, #tpu.memory_space<vmem>>, vector<1x128xf32>
      %32 = vector.broadcast %31 : vector<1x128xf32> to vector<16x128xf32>
      %33 = arith.addf %30, %32 : vector<16x128xf32>
      %c0_23 = arith.constant 0 : index
      %c0_24 = arith.constant 0 : index
      %34 = vector.load %arg7[%c0_23, %c0_24] : memref<16x128xf32, #tpu.memory_space<vmem>>, vector<16x128xf32>
      tpu.vector_store %arg7[%c0_23, %c0_24], %33 {strides = array<i32>} : memref<16x128xf32, #tpu.memory_space<vmem>>, vector<16x128xf32>,
    } else {
    }
    return
  }
  func.func @transform_0(%arg0: i32, %arg1: i32) -> (i32, i32) {
    %c0_i32 = arith.constant 0 : i32
    %c0_i32_0 = arith.constant 0 : i32
    return %arg0, %c0_i32 : i32, i32
  }
  func.func @transform_1(%arg0: i32, %arg1: i32) -> (i32, i32) {
    %c0_i32 = arith.constant 0 : i32
    %c0_i32_0 = arith.constant 0 : i32
    return %c0_i32, %arg1 : i32, i32
  }
  func.func @transform_2(%arg0: i32, %arg1: i32) -> (i32, i32) {
    %c0_i32 = arith.constant 0 : i32
    %c0_i32_0 = arith.constant 0 : i32
    return %arg1, %c0_i32 : i32, i32
  }
  func.func @transform_3(%arg0: i32, %arg1: i32) -> (i32, i32) {
    %c0_i32 = arith.constant 0 : i32
    %c0_i32_0 = arith.constant 0 : i32
    return %c0_i32, %arg1 : i32, i32
  }
  func.func @transform_4(%arg0: i32, %arg1: i32) -> (i32, i32) {
    %c0_i32 = arith.constant 0 : i32
    %c0_i32_0 = arith.constant 0 : i32
    %c0_i32_1 = arith.constant 0 : i32
    return %c0_i32, %c0_i32_0 : i32, i32
  }
  func.func @transform_5(%arg0: i32, %arg1: i32) -> (i32, i32) {
    %c0_i32 = arith.constant 0 : i32
    %c0_i32_0 = arith.constant 0 : i32
    return %arg0, %c0_i32 : i32, i32
  }
}

</mosaic_0001>

<llo_original>
// kernel: tpu_custom_call.1
$region0: #{tpu_custom_call.1}
  #allocation0 [shape = 'u32[]', space=smem, size = 0x4, offset = 0x4, fixed_abs, tag = 'smem constant byte address 0x4 - core index']
  #allocation1 [shape = 'u32[144,128]{1,0:T(1,128)}', space=vmem, size = 0x12000, scoped, tag = 'internal scratch']
  #allocation2 [shape = 'f32[16,128]{1,0:T(8,128)}', space=vmem, size = 0x2000, scoped, tag = 'scratch operand']
  %s0 = inlined_call_operand.hbm [shape: f32[16,128], index: 0, kind: input, shape index: {}]
  %s1 = inlined_call_operand.hbm [shape: f32[128,512], index: 1, kind: input, shape index: {}]
  %s2 = inlined_call_operand.hbm [shape: f32[256,128], index: 2, kind: input, shape index: {}]
  %s3 = inlined_call_operand.vmem [shape: f32[1,256], index: 3, kind: input, shape index: {}]
  %s4 = inlined_call_operand.vmem [shape: f32[1,128], index: 4, kind: input, shape index: {}]
  %s5 = inlined_call_operand.hbm [shape: f32[16,128], index: 5, kind: output, shape index: {}]
  %s6 = sld [smem:[#allocation0]]
  $region50: #{tpu_custom_call.1} parent=0
    _
  %s8 = ssub.s32 1, %s6
  %s9 = scalar_select 0, %s8, %s6
  $region1: #{tpu_custom_call.1} parent=0
    #allocation3 [shape = 'u8[8192]{0}', space=vmem, size = 0x2000, scoped, tag = 'input window, operand 0, single buffered']
    #allocation4 [shape = 's32[1]{0}', space=sflag, size = 0x4, scoped, tag = 'scoped memory for tpu_custom_call.1']
    #allocation5 [shape = 's32[1]{0}', space=sflag, size = 0x4, scoped, tag = 'scoped memory for tpu_custom_call.1']
    #allocation6 [shape = 'u8[262144]{0}', space=vmem, size = 0x40000, scoped, tag = 'input window, operand 1, single buffered']
    #allocation7 [shape = 's32[1]{0}', space=sflag, size = 0x4, scoped, tag = 'scoped memory for tpu_custom_call.1']
    #allocation8 [shape = 'u8[131072]{0}', space=vmem, size = 0x20000, scoped, tag = 'input window, operand 2, single buffered']
    #allocation9 [shape = 'u8[8192]{0}', space=vmem, size = 0x2000, scoped, tag = 'output window, operand 0, single buffered']
    %10 = vsyncpa [#allocation4], 0
    %11 = vsyncpa [#allocation7], 0
    %12 = vsyncpa [#allocation5], 0
    // Predicated region
    $region2: #{tpu_custom_call.1} parent=1 // pred_check
      _
    $region3: #{tpu_custom_call.1} parent=1 // pred_check_branch
      %14 = sbr.rel (0) target = $region5
    $region4: #{tpu_custom_call.1} parent=1 // pred_region
      %s16 = ssub.s32 256, 256
      %17 = vsyncadd [#allocation4], %s16
      %s18 = sshll.u32 [#allocation3], 4
      %s19 = int_to_ptr.vmem [resolvable:$true] %s18
      %24 = dma.hbm_to_vmem [thread:$0]  %s0, 256, %s19, [#allocation4], 128, 128, 8
    $region5: #{tpu_custom_call.1} parent=1 // pred_fallthru
      _
    // Predicated region
    $region6: #{tpu_custom_call.1} parent=1 // pred_check
      _
    $region7: #{tpu_custom_call.1} parent=1 // pred_check_branch
      %26 = sbr.rel (0) target = $region9
    $region8: #{tpu_custom_call.1} parent=1 // pred_region
      %s28 = ssub.s32 8192, 8192
      %29 = vsyncadd [#allocation7], %s28
      %s30 = sshll.u32 [#allocation6], 4
      %s31 = int_to_ptr.vmem [resolvable:$true] %s30
      %36 = dma.hbm_to_vmem [thread:$0]  %s1, 8192, %s31, [#allocation7], 512, 512, 32
    $region9: #{tpu_custom_call.1} parent=1 // pred_fallthru
      _
    // Predicated region
    $region10: #{tpu_custom_call.1} parent=1 // pred_check
      _
    $region11: #{tpu_custom_call.1} parent=1 // pred_check_branch
      %38 = sbr.rel (0) target = $region13
    $region12: #{tpu_custom_call.1} parent=1 // pred_region
      %s40 = ssub.s32 4096, 4096
      %41 = vsyncadd [#allocation7], %s40
      %s42 = sshll.u32 [#allocation8], 4
      %s43 = int_to_ptr.vmem [resolvable:$true] %s42
      %48 = dma.hbm_to_vmem [thread:$0]  %s2, 4096, %s43, [#allocation7], 128, 128, 8
    $region13: #{tpu_custom_call.1} parent=1 // pred_fallthru
      _
    // Predicated region
    $region14: #{tpu_custom_call.1} parent=1 // pred_check
      _
    $region15: #{tpu_custom_call.1} parent=1 // pred_check_branch
      %50 = sbr.rel (0) target = $region17
    $region16: #{tpu_custom_call.1} parent=1 // pred_region
      _
    $region17: #{tpu_custom_call.1} parent=1 // pred_fallthru
      _
    // Predicated region
    $region18: #{tpu_custom_call.1} parent=1 // pred_check
      _
    $region19: #{tpu_custom_call.1} parent=1 // pred_check_branch
      %52 = sbr.rel (0) target = $region21
    $region20: #{tpu_custom_call.1} parent=1 // pred_region
      _
    $region21: #{tpu_custom_call.1} parent=1 // pred_fallthru
      _
    // Predicated region
    $region22: #{tpu_custom_call.1} parent=1 // pred_check
      _
    $region23: #{tpu_custom_call.1} parent=1 // pred_check_branch
      %54 = sbr.rel (0) target = $region25
    $region24: #{tpu_custom_call.1} parent=1 // pred_region
      %55 = dma.done [#allocation4], 256
    $region25: #{tpu_custom_call.1} parent=1 // pred_fallthru
      _
    // Predicated region
    $region26: #{tpu_custom_call.1} parent=1 // pred_check
      _
    $region27: #{tpu_custom_call.1} parent=1 // pred_check_branch
      %57 = sbr.rel (0) target = $region29
    $region28: #{tpu_custom_call.1} parent=1 // pred_region
      %58 = dma.done [#allocation7], 8192
    $region29: #{tpu_custom_call.1} parent=1 // pred_fallthru
      _
    // Predicated region
    $region30: #{tpu_custom_call.1} parent=1 // pred_check
      _
    $region31: #{tpu_custom_call.1} parent=1 // pred_check_branch
      %60 = sbr.rel (0) target = $region33
    $region32: #{tpu_custom_call.1} parent=1 // pred_region
      %61 = dma.done [#allocation7], 4096
    $region33: #{tpu_custom_call.1} parent=1 // pred_fallthru
      _
    %p62 = scmp.eq.s32.totalorder 0, 0
    // Predicated region
    $region34: #{tpu_custom_call.1} parent=1 // pred_check
      %p63 = pneg %p62
    $region35: #{tpu_custom_call.1} parent=1 // pred_check_branch
      %65 = sbr.rel (%p63) target = $region37
    $region36: #{tpu_custom_call.1} parent=1 // pred_region
      %66 = vst [vmem:[#allocation2] sm:$0xff] 0.0
      %67 = vst [vmem:[#allocation2 + $0x8] sm:$0xff] 0.0
    $region37: #{tpu_custom_call.1} parent=1 // pred_fallthru
      _
    %v68 = vld [vmem:[#allocation3] sm:$0xff]
    %v69 = vld [vmem:[#allocation3 + $0x8] sm:$0xff]
    %v70 = vld [vmem:[#allocation6] sm:$0xff]
    %v71 = vld [vmem:[#allocation6 + $0x8] sm:$0xff]
    %v72 = vld [vmem:[#allocation6 + $0x10] sm:$0xff]
    %v73 = vld [vmem:[#allocation6 + $0x18] sm:$0xff]
    %v74 = vld [vmem:[#allocation6 + $0x20] sm:$0xff]
    %v75 = vld [vmem:[#allocation6 + $0x28] sm:$0xff]
    %v76 = vld [vmem:[#allocation6 + $0x30] sm:$0xff]
    %v77 = vld [vmem:[#allocation6 + $0x38] sm:$0xff]
    %v78 = vld [vmem:[#allocation6 + $0x40] sm:$0xff]
    %v79 = vld [vmem:[#allocation6 + $0x48] sm:$0xff]
    %v80 = vld [vmem:[#allocation6 + $0x50] sm:$0xff]
    %v81 = vld [vmem:[#allocation6 + $0x58] sm:$0xff]
    %v82 = vld [vmem:[#allocation6 + $0x60] sm:$0xff]
    %v83 = vld [vmem:[#allocation6 + $0x68] sm:$0xff]
    %v84 = vld [vmem:[#allocation6 + $0x70] sm:$0xff]
    %v85 = vld [vmem:[#allocation6 + $0x78] sm:$0xff]
    %v86 = vld [vmem:[#allocation6 + $0x80] sm:$0xff]
    %v87 = vld [vmem:[#allocation6 + $0x88] sm:$0xff]
    %v88 = vld [vmem:[#allocation6 + $0x90] sm:$0xff]
    %v89 = vld [vmem:[#allocation6 + $0x98] sm:$0xff]
    %v90 = vld [vmem:[#allocation6 + $0xa0] sm:$0xff]
    %v91 = vld [vmem:[#allocation6 + $0xa8] sm:$0xff]
    %v92 = vld [vmem:[#allocation6 + $0xb0] sm:$0xff]
    %v93 = vld [vmem:[#allocation6 + $0xb8] sm:$0xff]
    %v94 = vld [vmem:[#allocation6 + $0xc0] sm:$0xff]
    %v95 = vld [vmem:[#allocation6 + $0xc8] sm:$0xff]
    %v96 = vld [vmem:[#allocation6 + $0xd0] sm:$0xff]
    %v97 = vld [vmem:[#allocation6 + $0xd8] sm:$0xff]
    %v98 = vld [vmem:[#allocation6 + $0xe0] sm:$0xff]
    %v99 = vld [vmem:[#allocation6 + $0xe8] sm:$0xff]
    %v100 = vld [vmem:[#allocation6 + $0xf0] sm:$0xff]
    %v101 = vld [vmem:[#allocation6 + $0xf8] sm:$0xff]
    %v102 = vld [vmem:[#allocation6 + $0x100] sm:$0xff]
    %v103 = vld [vmem:[#allocation6 + $0x108] sm:$0xff]
    %v104 = vld [vmem:[#allocation6 + $0x110] sm:$0xff]
    %v105 = vld [vmem:[#allocation6 + $0x118] sm:$0xff]
    %v106 = vld [vmem:[#allocation6 + $0x120] sm:$0xff]
    %v107 = vld [vmem:[#allocation6 + $0x128] sm:$0xff]
    %v108 = vld [vmem:[#allocation6 + $0x130] sm:$0xff]
    %v109 = vld [vmem:[#allocation6 + $0x138] sm:$0xff]
    %v110 = vld [vmem:[#allocation6 + $0x140] sm:$0xff]
    %v111 = vld [vmem:[#allocation6 + $0x148] sm:$0xff]
    %v112 = vld [vmem:[#allocation6 + $0x150] sm:$0xff]
    %v113 = vld [vmem:[#allocation6 + $0x158] sm:$0xff]
    %v114 = vld [vmem:[#allocation6 + $0x160] sm:$0xff]
    %v115 = vld [vmem:[#allocation6 + $0x168] sm:$0xff]
    %v116 = vld [vmem:[#allocation6 + $0x170] sm:$0xff]
    %v117 = vld [vmem:[#allocation6 + $0x178] sm:$0xff]
    %v118 = vld [vmem:[#allocation6 + $0x180] sm:$0xff]
    %v119 = vld [vmem:[#allocation6 + $0x188] sm:$0xff]
    %v120 = vld [vmem:[#allocation6 + $0x190] sm:$0xff]
    %v121 = vld [vmem:[#allocation6 + $0x198] sm:$0xff]
    %v122 = vld [vmem:[#allocation6 + $0x1a0] sm:$0xff]
    %v123 = vld [vmem:[#allocation6 + $0x1a8] sm:$0xff]
    %v124 = vld [vmem:[#allocation6 + $0x1b0] sm:$0xff]
    %v125 = vld [vmem:[#allocation6 + $0x1b8] sm:$0xff]
    %v126 = vld [vmem:[#allocation6 + $0x1c0] sm:$0xff]
    %v127 = vld [vmem:[#allocation6 + $0x1c8] sm:$0xff]
    %v128 = vld [vmem:[#allocation6 + $0x1d0] sm:$0xff]
    %v129 = vld [vmem:[#allocation6 + $0x1d8] sm:$0xff]
    %v130 = vld [vmem:[#allocation6 + $0x1e0] sm:$0xff]
    %v131 = vld [vmem:[#allocation6 + $0x1e8] sm:$0xff]
    %v132 = vld [vmem:[#allocation6 + $0x1f0] sm:$0xff]
    %v133 = vld [vmem:[#allocation6 + $0x1f8] sm:$0xff]
    %134 = vmatprep.subr.mxu0 %v71
    %135 = vmatpush1.msra.mxu0 %v70
    %136 = vmatprep.subr.mxu0 %v75
    %137 = vmatpush1.msra.mxu0 %v74
    %138 = vmatprep.subr.mxu0 %v79
    %139 = vmatpush1.msra.mxu0 %v78
    %140 = vmatprep.subr.mxu0 %v83
    %141 = vmatpush1.msra.mxu0 %v82
    %142 = vmatprep.subr.mxu0 %v87
    %143 = vmatpush1.msra.mxu0 %v86
    %144 = vmatprep.subr.mxu0 %v91
    %145 = vmatpush1.msra.mxu0 %v90
    %146 = vmatprep.subr.mxu0 %v95
    %147 = vmatpush1.msra.mxu0 %v94
    %148 = vmatprep.subr.mxu0 %v99
    %149 = vmatpush1.msra.mxu0 %v98
    %150 = vmatprep.subr.mxu0 %v103
    %151 = vmatpush1.msra.mxu0 %v102
    %152 = vmatprep.subr.mxu0 %v107
    %153 = vmatpush1.msra.mxu0 %v106
    %154 = vmatprep.subr.mxu0 %v111
    %155 = vmatpush1.msra.mxu0 %v110
    %156 = vmatprep.subr.mxu0 %v115
    %157 = vmatpush1.msra.mxu0 %v114
    %158 = vmatprep.subr.mxu0 %v119
    %159 = vmatpush1.msra.mxu0 %v118
    %160 = vmatprep.subr.mxu0 %v123
    %161 = vmatpush1.msra.mxu0 %v122
    %162 = vmatprep.subr.mxu0 %v127
    %163 = vmatpush1.msra.mxu0 %v126
    %164 = vmatprep.subr.mxu0 %v131
    %165 = vmatpush1.msra.mxu0 %v130
    %166 = vmatprep.subr.mxu0 0.0
    %167 = vmatpush1.msra.mxu0 0.0
    %168 = vmatprep.subr.mxu0 0.0
    %169 = vmatpush1.msra.mxu0 0.0
    %170 = vmatprep.subr.mxu0 0.0
    %171 = vmatpush1.msra.mxu0 0.0
    %172 = vmatprep.subr.mxu0 0.0
    %173 = vmatpush1.msra.mxu0 0.0
    %174 = vmatprep.subr.mxu0 0.0
    %175 = vmatpush1.msra.mxu0 0.0
    %176 = vmatprep.subr.mxu0 0.0
    %177 = vmatpush1.msra.mxu0 0.0
    %178 = vmatprep.subr.mxu0 0.0
    %179 = vmatpush1.msra.mxu0 0.0
    %180 = vmatprep.subr.mxu0 0.0
    %181 = vmatpush1.msra.mxu0 0.0
    %182 = vmatprep.subr.mxu0 0.0
    %183 = vmatpush1.msra.mxu0 0.0
    %184 = vmatprep.subr.mxu0 0.0
    %185 = vmatpush1.msra.mxu0 0.0
    %186 = vmatprep.subr.mxu0 0.0
    %187 = vmatpush1.msra.mxu0 0.0
    %188 = vmatprep.subr.mxu0 0.0
    %189 = vmatpush1.msra.mxu0 0.0
    %190 = vmatprep.subr.mxu0 0.0
    %191 = vmatpush1.msra.mxu0 0.0
    %192 = vmatprep.subr.mxu0 0.0
    %193 = vmatpush1.msra.mxu0 0.0
    %194 = vmatprep.subr.mxu0 0.0
    %195 = vmatpush1.msra.mxu0 0.0
    %196 = vmatprep.subr.mxu0 0.0
    %197 = vmatpush1.msra.mxu0 0.0
    %198 = vmatprep.mubr.f32.mxu0 0.0
    %199 = vmatmul.mubr.f32.gmra.mrb[0].mxu0 %v68
    %v200 = vpop.f32.mrb[0].mxu0
    %v201 = vadd.f32 0.0, %v200
    %v202 = vpop.f32.mrb[0].mxu0
    %v203 = vadd.f32 0.0, %v202
    %204 = vmatprep.mubr.f32.mxu0 0.0
    %205 = vmatmul.mubr.f32.gmra.mrb[0].mxu0 %v69
    %v206 = vpop.f32.mrb[0].mxu0
    %v207 = vadd.f32 0.0, %v206
    %v208 = vpop.f32.mrb[0].mxu0
    %v209 = vadd.f32 0.0, %v208
    %210 = vdwg.mxu0
    %211 = vmatprep.subr.mxu0 %v73
    %212 = vmatpush1.msra.mxu0 %v72
    %213 = vmatprep.subr.mxu0 %v77
    %214 = vmatpush1.msra.mxu0 %v76
    %215 = vmatprep.subr.mxu0 %v81
    %216 = vmatpush1.msra.mxu0 %v80
    %217 = vmatprep.subr.mxu0 %v85
    %218 = vmatpush1.msra.mxu0 %v84
    %219 = vmatprep.subr.mxu0 %v89
    %220 = vmatpush1.msra.mxu0 %v88
    %221 = vmatprep.subr.mxu0 %v93
    %222 = vmatpush1.msra.mxu0 %v92
    %223 = vmatprep.subr.mxu0 %v97
    %224 = vmatpush1.msra.mxu0 %v96
    %225 = vmatprep.subr.mxu0 %v101
    %226 = vmatpush1.msra.mxu0 %v100
    %227 = vmatprep.subr.mxu0 %v105
    %228 = vmatpush1.msra.mxu0 %v104
    %229 = vmatprep.subr.mxu0 %v109
    %230 = vmatpush1.msra.mxu0 %v108
    %231 = vmatprep.subr.mxu0 %v113
    %232 = vmatpush1.msra.mxu0 %v112
    %233 = vmatprep.subr.mxu0 %v117
    %234 = vmatpush1.msra.mxu0 %v116
    %235 = vmatprep.subr.mxu0 %v121
    %236 = vmatpush1.msra.mxu0 %v120
    %237 = vmatprep.subr.mxu0 %v125
    %238 = vmatpush1.msra.mxu0 %v124
    %239 = vmatprep.subr.mxu0 %v129
    %240 = vmatpush1.msra.mxu0 %v128
    %241 = vmatprep.subr.mxu0 %v133
    %242 = vmatpush1.msra.mxu0 %v132
    %243 = vmatprep.subr.mxu0 0.0
    %244 = vmatpush1.msra.mxu0 0.0
    %245 = vmatprep.subr.mxu0 0.0
    %246 = vmatpush1.msra.mxu0 0.0
    %247 = vmatprep.subr.mxu0 0.0
    %248 = vmatpush1.msra.mxu0 0.0
    %249 = vmatprep.subr.mxu0 0.0
    %250 = vmatpush1.msra.mxu0 0.0
    %251 = vmatprep.subr.mxu0 0.0
    %252 = vmatpush1.msra.mxu0 0.0
    %253 = vmatprep.subr.mxu0 0.0
    %254 = vmatpush1.msra.mxu0 0.0
    %255 = vmatprep.subr.mxu0 0.0
    %256 = vmatpush1.msra.mxu0 0.0
    %257 = vmatprep.subr.mxu0 0.0
    %258 = vmatpush1.msra.mxu0 0.0
    %259 = vmatprep.subr.mxu0 0.0
    %260 = vmatpush1.msra.mxu0 0.0
    %261 = vmatprep.subr.mxu0 0.0
    %262 = vmatpush1.msra.mxu0 0.0
    %263 = vmatprep.subr.mxu0 0.0
    %264 = vmatpush1.msra.mxu0 0.0
    %265 = vmatprep.subr.mxu0 0.0
    %266 = vmatpush1.msra.mxu0 0.0
    %267 = vmatprep.subr.mxu0 0.0
    %268 = vmatpush1.msra.mxu0 0.0
    %269 = vmatprep.subr.mxu0 0.0
    %270 = vmatpush1.msra.mxu0 0.0
    %271 = vmatprep.subr.mxu0 0.0
    %272 = vmatpush1.msra.mxu0 0.0
    %273 = vmatprep.subr.mxu0 0.0
    %274 = vmatpush1.msra.mxu0 0.0
    %275 = vmatprep.mubr.f32.mxu0 0.0
    %276 = vmatmul.mubr.f32.gmra.mrb[0].mxu0 %v68
    %v277 = vpop.f32.mrb[0].mxu0
    %v278 = vadd.f32 0.0, %v277
    %v279 = vpop.f32.mrb[0].mxu0
    %v280 = vadd.f32 0.0, %v279
    %281 = vmatprep.mubr.f32.mxu0 0.0
    %282 = vmatmul.mubr.f32.gmra.mrb[0].mxu0 %v69
    %v283 = vpop.f32.mrb[0].mxu0
    %v284 = vadd.f32 0.0, %v283
    %v285 = vpop.f32.mrb[0].mxu0
    %v286 = vadd.f32 0.0, %v285
    %287 = vdwg.mxu0
    %v288 = vmul.f32 %v201, 0.5
    %v289 = vmul.f32 %v203, 0.5
    %v290 = vmul.f32 %v207, 0.5
    %v291 = vmul.f32 %v209, 0.5
    %v292 = vmul.f32 %v201, 0.70710677
    %v293 = vmul.f32 %v203, 0.70710677
    %v294 = vmul.f32 %v207, 0.70710677
    %v295 = vmul.f32 %v209, 0.70710677
    %v296 = verf.f32.pop %v292
    %v297 = verf.f32.pop %v293
    %v298 = verf.f32.pop %v294
    %v299 = verf.f32.pop %v295
    %v300 = vadd.f32 %v296, 1.0
    %v301 = vadd.f32 %v297, 1.0
    %v302 = vadd.f32 %v298, 1.0
    %v303 = vadd.f32 %v299, 1.0
    %v304 = vmul.f32 %v288, %v300
    %v305 = vmul.f32 %v289, %v301
    %v306 = vmul.f32 %v290, %v302
    %v307 = vmul.f32 %v291, %v303
    %v308 = vmul.f32 %v304, %v278
    %v309 = vmul.f32 %v305, %v280
    %v310 = vmul.f32 %v306, %v284
    %v311 = vmul.f32 %v307, %v286
    %v312 = vld [vmem:[%s3] sm:$0x3]
    %v314 = vlaneseq
    %v315 = vshrl.u32 %v314, 7
    %v316 = vsub.s32 0, %v315
    %v317 = vrot.slane %v312, %v316
    %v318 = vlaneseq
    %v319 = vshrl.u32 %v318, 7
    %v320 = vsub.s32 1, %v319
    %v321 = vrot.slane %v312, %v320
    %v324 = vadd.f32 %v308, %v317
    %v325 = vadd.f32 %v309, %v321
    %v326 = vadd.f32 %v310, %v317
    %v327 = vadd.f32 %v311, %v321
    %v328 = vld [vmem:[#allocation2] sm:$0xff]
    %v329 = vld [vmem:[#allocation2 + $0x8] sm:$0xff]
    %v330 = vld [vmem:[#allocation8] sm:$0xff]
    %v331 = vld [vmem:[#allocation8 + $0x8] sm:$0xff]
    %v332 = vld [vmem:[#allocation8 + $0x10] sm:$0xff]
    %v333 = vld [vmem:[#allocation8 + $0x18] sm:$0xff]
    %v334 = vld [vmem:[#allocation8 + $0x20] sm:$0xff]
    %v335 = vld [vmem:[#allocation8 + $0x28] sm:$0xff]
    %v336 = vld [vmem:[#allocation8 + $0x30] sm:$0xff]
    %v337 = vld [vmem:[#allocation8 + $0x38] sm:$0xff]
    %v338 = vld [vmem:[#allocation8 + $0x40] sm:$0xff]
    %v339 = vld [vmem:[#allocation8 + $0x48] sm:$0xff]
    %v340 = vld [vmem:[#allocation8 + $0x50] sm:$0xff]
    %v341 = vld [vmem:[#allocation8 + $0x58] sm:$0xff]
    %v342 = vld [vmem:[#allocation8 + $0x60] sm:$0xff]
    %v343 = vld [vmem:[#allocation8 + $0x68] sm:$0xff]
    %v344 = vld [vmem:[#allocation8 + $0x70] sm:$0xff]
    %v345 = vld [vmem:[#allocation8 + $0x78] sm:$0xff]
    %v346 = vld [vmem:[#allocation8 + $0x80] sm:$0xff]
    %v347 = vld [vmem:[#allocation8 + $0x88] sm:$0xff]
    %v348 = vld [vmem:[#allocation8 + $0x90] sm:$0xff]
    %v349 = vld [vmem:[#allocation8 + $0x98] sm:$0xff]
    %v350 = vld [vmem:[#allocation8 + $0xa0] sm:$0xff]
    %v351 = vld [vmem:[#allocation8 + $0xa8] sm:$0xff]
    %v352 = vld [vmem:[#allocation8 + $0xb0] sm:$0xff]
    %v353 = vld [vmem:[#allocation8 + $0xb8] sm:$0xff]
    %v354 = vld [vmem:[#allocation8 + $0xc0] sm:$0xff]
    %v355 = vld [vmem:[#allocation8 + $0xc8] sm:$0xff]
    %v356 = vld [vmem:[#allocation8 + $0xd0] sm:$0xff]
    %v357 = vld [vmem:[#allocation8 + $0xd8] sm:$0xff]
    %v358 = vld [vmem:[#allocation8 + $0xe0] sm:$0xff]
    %v359 = vld [vmem:[#allocation8 + $0xe8] sm:$0xff]
    %v360 = vld [vmem:[#allocation8 + $0xf0] sm:$0xff]
    %v361 = vld [vmem:[#allocation8 + $0xf8] sm:$0xff]
    %362 = vmatprep.subr.mxu0 0.0
    %363 = vmatpush1.msra.mxu0 %v330
    %364 = vmatprep.subr.mxu0 0.0
    %365 = vmatpush1.msra.mxu0 %v331
    %366 = vmatprep.subr.mxu0 0.0
    %367 = vmatpush1.msra.mxu0 %v332
    %368 = vmatprep.subr.mxu0 0.0
    %369 = vmatpush1.msra.mxu0 %v333
    %370 = vmatprep.subr.mxu0 0.0
    %371 = vmatpush1.msra.mxu0 %v334
    %372 = vmatprep.subr.mxu0 0.0
    %373 = vmatpush1.msra.mxu0 %v335
    %374 = vmatprep.subr.mxu0 0.0
    %375 = vmatpush1.msra.mxu0 %v336
    %376 = vmatprep.subr.mxu0 0.0
    %377 = vmatpush1.msra.mxu0 %v337
    %378 = vmatprep.subr.mxu0 0.0
    %379 = vmatpush1.msra.mxu0 %v338
    %380 = vmatprep.subr.mxu0 0.0
    %381 = vmatpush1.msra.mxu0 %v339
    %382 = vmatprep.subr.mxu0 0.0
    %383 = vmatpush1.msra.mxu0 %v340
    %384 = vmatprep.subr.mxu0 0.0
    %385 = vmatpush1.msra.mxu0 %v341
    %386 = vmatprep.subr.mxu0 0.0
    %387 = vmatpush1.msra.mxu0 %v342
    %388 = vmatprep.subr.mxu0 0.0
    %389 = vmatpush1.msra.mxu0 %v343
    %390 = vmatprep.subr.mxu0 0.0
    %391 = vmatpush1.msra.mxu0 %v344
    %392 = vmatprep.subr.mxu0 0.0
    %393 = vmatpush1.msra.mxu0 %v345
    %394 = vmatprep.subr.mxu0 0.0
    %395 = vmatpush1.msra.mxu0 %v346
    %396 = vmatprep.subr.mxu0 0.0
    %397 = vmatpush1.msra.mxu0 %v347
    %398 = vmatprep.subr.mxu0 0.0
    %399 = vmatpush1.msra.mxu0 %v348
    %400 = vmatprep.subr.mxu0 0.0
    %401 = vmatpush1.msra.mxu0 %v349
    %402 = vmatprep.subr.mxu0 0.0
    %403 = vmatpush1.msra.mxu0 %v350
    %404 = vmatprep.subr.mxu0 0.0
    %405 = vmatpush1.msra.mxu0 %v351
    %406 = vmatprep.subr.mxu0 0.0
    %407 = vmatpush1.msra.mxu0 %v352
    %408 = vmatprep.subr.mxu0 0.0
    %409 = vmatpush1.msra.mxu0 %v353
    %410 = vmatprep.subr.mxu0 0.0
    %411 = vmatpush1.msra.mxu0 %v354
    %412 = vmatprep.subr.mxu0 0.0
    %413 = vmatpush1.msra.mxu0 %v355
    %414 = vmatprep.subr.mxu0 0.0
    %415 = vmatpush1.msra.mxu0 %v356
    %416 = vmatprep.subr.mxu0 0.0
    %417 = vmatpush1.msra.mxu0 %v357
    %418 = vmatprep.subr.mxu0 0.0
    %419 = vmatpush1.msra.mxu0 %v358
    %420 = vmatprep.subr.mxu0 0.0
    %421 = vmatpush1.msra.mxu0 %v359
    %422 = vmatprep.subr.mxu0 0.0
    %423 = vmatpush1.msra.mxu0 %v360
    %424 = vmatprep.subr.mxu0 0.0
    %425 = vmatpush1.msra.mxu0 %v361
    %426 = vmatprep.mubr.f32.mxu0 %v325
    %427 = vmatmul.mubr.f32.gmra.mrb[0].mxu0 %v324
    %v428 = vpop.f32.mrb[0].mxu0
    %v429 = vadd.f32 0.0, %v428
    %v430 = vpop.f32.mrb[0].mxu0
    %431 = vmatprep.mubr.f32.mxu0 %v327
    %432 = vmatmul.mubr.f32.gmra.mrb[0].mxu0 %v326
    %v433 = vpop.f32.mrb[0].mxu0
    %v434 = vadd.f32 0.0, %v433
    %v435 = vpop.f32.mrb[0].mxu0
    %436 = vdwg.mxu0
    %v437 = vadd.f32 %v328, %v429
    %v438 = vadd.f32 %v329, %v434
    %439 = vst [vmem:[#allocation2] sm:$0xff] %v437
    %440 = vst [vmem:[#allocation2 + $0x8] sm:$0xff] %v438
    // Predicated region
    $region38: #{tpu_custom_call.1} parent=1 // pred_check
      %p441 = pneg %p62
    $region39: #{tpu_custom_call.1} parent=1 // pred_check_branch
      %443 = sbr.rel (%p441) target = $region41
    $region40: #{tpu_custom_call.1} parent=1 // pred_region
      %v444 = vld [vmem:[#allocation2] sm:$0xff]
      %v445 = vld [vmem:[#allocation2 + $0x8] sm:$0xff]
      %v446 = vld [vmem:[%s4] sm:$0x1]
      %v448 = vlaneseq
      %v449 = vshrl.u32 %v448, 7
      %v450 = vsub.s32 0, %v449
      %v451 = vrot.slane %v446, %v450
      %v453 = vadd.f32 %v444, %v451
      %v454 = vadd.f32 %v445, %v451
      %455 = vst [vmem:[#allocation9] sm:$0xff] %v453
      %456 = vst [vmem:[#allocation9 + $0x8] sm:$0xff] %v454
    $region41: #{tpu_custom_call.1} parent=1 // pred_fallthru
      _
    // Predicated region
    $region42: #{tpu_custom_call.1} parent=1 // pred_check
      _
    $region43: #{tpu_custom_call.1} parent=1 // pred_check_branch
      %458 = sbr.rel (0) target = $region45
    $region44: #{tpu_custom_call.1} parent=1 // pred_region
      %s460 = ssub.s32 256, 256
      %461 = vsyncadd [#allocation5], %s460
      %s462 = sshll.u32 [#allocation9], 4
      %s463 = int_to_ptr.vmem [resolvable:$true] %s462
      %468 = dma.vmem_to_hbm [thread:$0]  %s463, 256, %s5, [#allocation5], 128, 128, 8
    $region45: #{tpu_custom_call.1} parent=1 // pred_fallthru
      _
    // Predicated region
    $region46: #{tpu_custom_call.1} parent=1 // pred_check
      _
    $region47: #{tpu_custom_call.1} parent=1 // pred_check_branch
      %470 = sbr.rel (0) target = $region49
    $region48: #{tpu_custom_call.1} parent=1 // pred_region
      %471 = dma.done [#allocation5], 256
    $region49: #{tpu_custom_call.1} parent=1 // pred_fallthru
      _
    %472 = vsyncpa [#allocation4], 1
    %473 = vsyncpa [#allocation7], 1
    %474 = vsyncpa [#allocation5], 1

</llo_original>
